<compile_context>
chip_gen: v6e
topology: v6e:2x2x1
jax: 0.10.0
libtpu: 0.0.40
codegen_flags: <defaults>
</compile_context>

<pallas_src>
import functools

import jax
import jax.numpy as jnp
from jax.experimental import pallas as pl
from jax.experimental.pallas import tpu as pltpu

SMOOTH = 0.0001

_LANES = 128
_SUBLANES = 8
_GROUP = _LANES * _SUBLANES   # 1024 elements = one (8, 128) f32 vreg slab
_CHUNK = 8                    # vreg-groups per inner-loop iteration (32 KiB f32)


def _device_kind():
    try:
        return jax.devices()[0].device_kind.lower()
    except Exception:  # pragma: no cover - defensive
        return ""


def _tuning():
    """Generation-aware (two_tensorcores, max_block_groups, vmem_limit_bytes)."""
    kind = _device_kind()
    two_tc = any(tag in kind for tag in ("v4", "v5p", "v7"))
    if any(tag in kind for tag in ("v6", "v7")):
        # Fast HBM: bigger blocks to amortize the ~0.35 us per-step overhead.
        return two_tc, 1024, 48 * 1024 * 1024
    if any(tag in kind for tag in ("v2", "v3")):
        # Small-VMEM parts: keep the working set modest.
        return two_tc, 256, 16 * 1024 * 1024
    return two_tc, 512, 32 * 1024 * 1024        # v4 / v5e / v5p / unknown


def _plan_tiling(d, n, two_tc, max_groups):
    """Split D into (splits, k_tiles, g_tile) vreg-group tiles."""
    g_total = -(-d // _GROUP)                     # ceil: (8,128) groups per row
    # A 2-way reduction split only pays off on 2-TC parts when the batch axis
    # alone cannot feed both cores.
    splits = 2 if (two_tc and n == 1 and g_total >= 16) else 1
    g_per_split = -(-g_total // splits)
    k_tiles = -(-g_per_split // max_groups)
    g_tile = -(-g_per_split // k_tiles)
    return splits, k_tiles, g_tile, g_total


def _dismap_dice_kernel(apply_sigmoid, needs_mask, g_total, g_tile, k_tiles,
                        x_ref, t_ref, d_ref, inter_ref, den_ref):
    """Accumulate per-(batch, split) partial sums of the intersection and the
    fused denominator into resident (8, 128) output accumulators."""
    k = pl.program_id(2)

    @pl.when(k == 0)
    def _():
        inter_ref[...] = jnp.zeros_like(inter_ref)
        den_ref[...] = jnp.zeros_like(den_ref)

    # First (8,128)-group handled by this block, in global group coordinates.
    base = (pl.program_id(1) * k_tiles + k) * g_tile

    def piece(off, size, use_mask):
        """Partial sums over `size` (static) groups starting at group `off`."""
        x = x_ref[pl.ds(off, size), :, :].astype(jnp.float32)
        t = t_ref[pl.ds(off, size), :, :].astype(jnp.float32)
        dm = d_ref[pl.ds(off, size), :, :].astype(jnp.float32)
        if apply_sigmoid:
            # sigmoid(x) == 0.5 * tanh(0.5 * x) + 0.5 : one EUP transcendental.
            p = 0.5 * jnp.tanh(0.5 * x) + 0.5
        else:
            p = x
        inter = p * t
        u = p + t
        den = u + dm * (u - inter)       # == (dm + 1) * (p + t) - dm * (p * t)
        if use_mask:
            gid = base + off + jax.lax.broadcasted_iota(jnp.int32, inter.shape, 0)
            valid = gid < g_total
            inter = jnp.where(valid, inter, 0.0)
            den = jnp.where(valid, den, 0.0)
        # Reduce only the leading (vreg-row) axis: pure VALU adds, no XLU work.
        return jnp.sum(inter, axis=0), jnp.sum(den, axis=0)

    def block_sums(use_mask):
        zeros = jnp.zeros((_SUBLANES, _LANES), jnp.float32)
        n_full = g_tile // _CHUNK
        rem = g_tile % _CHUNK

        def body(c, carry):
            ia, da = carry
            off = pl.multiple_of(c * _CHUNK, _CHUNK)
            pi, pd = piece(off, _CHUNK, use_mask)
            return ia + pi, da + pd

        if n_full:
            ia, da = jax.lax.fori_loop(0, n_full, body, (zeros, zeros), unroll=2)
        else:
            ia, da = zeros, zeros
        if rem:
            pi, pd = piece(n_full * _CHUNK, rem, use_mask)
            ia, da = ia + pi, da + pd
        return ia, da

    if needs_mask:
        # Only blocks that overlap the tail of the group axis pay for the
        # iota/compare/select masking; all other blocks run the clean path.
        is_partial = base + g_tile > g_total

        @pl.when(is_partial)
        def _():
            ia, da = block_sums(True)
            inter_ref[...] += ia
            den_ref[...] += da

        @pl.when(jnp.logical_not(is_partial))
        def _():
            ia, da = block_sums(False)
            inter_ref[...] += ia
            den_ref[...] += da
    else:
        ia, da = block_sums(False)
        inter_ref[...] += ia
        den_ref[...] += da


def dismap_dice_loss(output, target, distance_map, type="sigmoid",
                     *, block_groups=None, force_splits=None):
    """JAX/Pallas equivalent of DismapDiceLoss.forward.

    output, target, distance_map: (N, C, H, W) arrays (f32 or bf16 accepted;
    the kernel upcasts to f32).  Returns a scalar float32 loss.
    `block_groups` / `force_splits` are test hooks that override the
    generation-aware tiling plan.
    """
    n = output.shape[0]
    d = 1
    for s in output.shape[1:]:
        d *= s

    two_tc, max_groups, vmem_limit = _tuning()
    if block_groups is not None:
        max_groups = block_groups

    if type == "sigmoid":
        x_flat = output.reshape(n, d)
        apply_sigmoid = True
    else:
        # TODO(synk): fold the channel softmax into the kernel (needs
        # channel-major tiling); for now it stays in XLA glue, which costs one
        # extra full pass over the activations in HBM.
        x_flat = jax.nn.softmax(output, axis=1).reshape(n, d)
        apply_sigmoid = False

    t_flat = target.reshape(n, d)
    dm_flat = distance_map.reshape(n, d)

    splits, k_tiles, g_tile, g_total = _plan_tiling(d, n, two_tc, max_groups)
    if force_splits is not None and g_total >= force_splits:   # test hook
        splits = force_splits
        g_per_split = -(-g_total // splits)
        k_tiles = -(-g_per_split // max_groups)
        g_tile = -(-g_per_split // k_tiles)
    cover = splits * k_tiles * g_tile        # groups the grid will touch

    elem_pad = g_total * _GROUP - d          # > 0 iff D is not a multiple of 1024
    if elem_pad or (cover - g_total) >= g_tile:
        # Element-ragged rows cannot be reshaped into whole (8,128) slabs
        # without a materialized pad.  Neutral values (t = 0, dmap = -1) make
        # both partial sums exactly zero for every padded element.
        # TODO(synk): replace with a manual-DMA ragged tail to kill this extra
        # read+write copy of all three inputs when D % 1024 != 0.
        pad_to = cover * _GROUP - d
        x_flat = jnp.pad(x_flat, ((0, 0), (0, pad_to)))
        t_flat = jnp.pad(t_flat, ((0, 0), (0, pad_to)))
        dm_flat = jnp.pad(dm_flat, ((0, 0), (0, pad_to)), constant_values=-1.0)
        g_arr = cover
        needs_mask = False
    else:
        # D is a multiple of 1024: the reshape below is a free bitcast.  If the
        # block plan over-covers the group axis, mask the tail in-kernel
        # instead of padding — zero HBM copies.
        g_arr = g_total
        needs_mask = cover > g_total

    x4 = x_flat.reshape(n, g_arr, _SUBLANES, _LANES)
    t4 = t_flat.reshape(n, g_arr, _SUBLANES, _LANES)
    dm4 = dm_flat.reshape(n, g_arr, _SUBLANES, _LANES)

    grid = (n, splits, k_tiles)

    def in_map(i, j, k):
        return (i, j * k_tiles + k, 0, 0)

    def out_map(i, j, k):
        return (i * splits + j, 0, 0)

    kernel = functools.partial(_dismap_dice_kernel, apply_sigmoid, needs_mask,
                               g_total, g_tile, k_tiles)
    in_blk = (pl.Squeezed(), g_tile, _SUBLANES, _LANES)
    out_blk = (pl.Squeezed(), _SUBLANES, _LANES)

    inter_part, den_part = pl.pallas_call(
        kernel,
        out_shape=(
            jax.ShapeDtypeStruct((n * splits, _SUBLANES, _LANES), jnp.float32),
            jax.ShapeDtypeStruct((n * splits, _SUBLANES, _LANES), jnp.float32),
        ),
        grid_spec=pltpu.PrefetchScalarGridSpec(
            num_scalar_prefetch=0,
            grid=grid,
            in_specs=[
                pl.BlockSpec(in_blk, in_map),
                pl.BlockSpec(in_blk, in_map),
                pl.BlockSpec(in_blk, in_map),
            ],
            out_specs=[
                pl.BlockSpec(out_blk, out_map),
                pl.BlockSpec(out_blk, out_map),
            ],
        ),
        compiler_params=pltpu.CompilerParams(
            dimension_semantics=("parallel", "parallel", "arbitrary"),
            vmem_limit_bytes=vmem_limit,
        ),
    )(x4, t4, dm4)

    # Tiny glue: combine the (8,128) partials per (batch, split) and finish.
    inter_sum = inter_part.reshape(n, -1).sum(axis=1)
    den_sum = den_part.reshape(n, -1).sum(axis=1)
    loss = 1.0 - 2.0 * (inter_sum + SMOOTH) / den_sum
    return jnp.sum(loss) / n


def _reference(output, target, distance_map, type="sigmoid"):
    n = output.shape[0]
    smooth = 0.0001
    if type == "sigmoid":
        p = jax.nn.sigmoid(output)
    else:
        p = jax.nn.softmax(output, axis=1)
    p = p.reshape(n, -1)
    t = target.reshape(n, -1)
    dm = distance_map.reshape(n, -1)
    inter = p * t
    union = p + t
    loss = 1 - 2 * (inter.sum(1) + smooth) / (
        ((dm + 1) * union).sum(1) - (dm * inter).sum(1))
    return loss.sum() / n


if __name__ == "__main__":
    key = jax.random.PRNGKey(0)

    def make_inputs(shape, key):
        k1, k2, k3 = jax.random.split(key, 3)
        out = jax.random.normal(k1, shape, dtype=jnp.float32)
        tgt = (jax.random.uniform(k2, shape) > 0.5).astype(jnp.float32)
        dmap = jax.random.uniform(k3, shape, dtype=jnp.float32) * 2.0
        return out, tgt, dmap

    k_a, k_b, k_c, k_d = jax.random.split(key, 4)

    # 1) Exact fit (D = 4*16*16 = 1024): zero-copy bitcast path, no mask/pad.
    out_a, tgt_a, dm_a = make_inputs((2, 4, 16, 16), k_a)
    for typ in ("sigmoid", "softmax"):
        loss = jax.block_until_ready(dismap_dice_loss(out_a, tgt_a, dm_a, type=typ))
        ref = _reference(out_a, tgt_a, dm_a, type=typ)
        assert jnp.allclose(loss, ref, rtol=2e-5, atol=2e-5), (typ, loss, ref)

    # 2) Element-ragged D = 4*18*18 = 1296: neutral-pad fallback path.
    out_b, tgt_b, dm_b = make_inputs((2, 4, 18, 18), k_b)
    loss_b = jax.block_until_ready(dismap_dice_loss(out_b, tgt_b, dm_b))
    ref_b = _reference(out_b, tgt_b, dm_b)
    assert jnp.allclose(loss_b, ref_b, rtol=2e-5, atol=2e-5), (loss_b, ref_b)

    # 3) D multiple of 1024 (257 groups) with a block plan that over-covers the
    #    group axis: zero-copy reshape + in-kernel tail mask path.
    out_c, tgt_c, dm_c = make_inputs((2, 257, 32, 32), k_c)
    loss_c = jax.block_until_ready(
        dismap_dice_loss(out_c, tgt_c, dm_c, block_groups=96))
    ref_c = _reference(out_c, tgt_c, dm_c)
    assert jnp.allclose(loss_c, ref_c, rtol=2e-5, atol=2e-5), (loss_c, ref_c)

    # 4) Forced 2-way reduction split (v7x-style) + mask + inner-loop tail.
    out_d, tgt_d, dm_d = make_inputs((1, 257, 32, 32), k_d)
    loss_d = jax.block_until_ready(
        dismap_dice_loss(out_d, tgt_d, dm_d, block_groups=64, force_splits=2))
    ref_d = _reference(out_d, tgt_d, dm_d)
    assert jnp.allclose(loss_d, ref_d, rtol=2e-5, atol=2e-5), (loss_d, ref_d)

    print("KERNEL_OK")
</pallas_src>

<mosaic_0001>
module attributes {stable_mosaic.version = 11 : i64} {
  func.func @_dismap_dice_kernel(%arg0: i32, %arg1: i32, %arg2: i32, %arg3: memref<1x1x8x128xf32, #tpu.memory_space<vmem>>, %arg4: memref<1x1x8x128xf32, #tpu.memory_space<vmem>>, %arg5: memref<1x1x8x128xf32, #tpu.memory_space<vmem>>, %arg6: memref<1x8x128xf32, #tpu.memory_space<vmem>>, %arg7: memref<1x8x128xf32, #tpu.memory_space<vmem>>) attributes {dimension_semantics = [#tpu.dimension_semantics<parallel>, #tpu.dimension_semantics<parallel>, #tpu.dimension_semantics<arbitrary>], iteration_bounds = array<i64: 2, 1, 1>, scalar_prefetch = 0 : i64, scratch_operands = 0 : i64, tpu.core_type = #tpu.core_type<tc>, window_params = [{transform_indices = @transform_0, window_bounds = array<i64: 1, 1, 8, 128>}, {transform_indices = @transform_1, window_bounds = array<i64: 1, 1, 8, 128>}, {transform_indices = @transform_2, window_bounds = array<i64: 1, 1, 8, 128>}, {transform_indices = @transform_3, window_bounds = array<i64: 1, 8, 128>}, {transform_indices = @transform_4, window_bounds = array<i64: 1, 8, 128>}]} {
    %c0_i32 = arith.constant 0 : i32
    %0 = arith.cmpi eq, %arg2, %c0_i32 : i32
    %1 = arith.extui %0 : i1 to i32
    %c0_i32_0 = arith.constant 0 : i32
    %2 = arith.cmpi ne, %1, %c0_i32_0 : i32
    scf.if %2 {
      %cst_29 = arith.constant 0.000000e+00 : f32
      %38 = vector.broadcast %cst_29 : f32 to vector<8x128xf32>
      %c0_30 = arith.constant 0 : index
      %c0_31 = arith.constant 0 : index
      %c0_32 = arith.constant 0 : index
      %39 = vector.load %arg6[%c0_30, %c0_31, %c0_32] : memref<1x8x128xf32, #tpu.memory_space<vmem>>, vector<1x8x128xf32>
      %40 = vector.shape_cast %39 : vector<1x8x128xf32> to vector<8x128xf32>
      %41 = vector.shape_cast %38 : vector<8x128xf32> to vector<1x8x128xf32>
      tpu.vector_store %arg6[%c0_30, %c0_31, %c0_32], %41 {strides = array<i32>} : memref<1x8x128xf32, #tpu.memory_space<vmem>>, vector<1x8x128xf32>,
      %cst_33 = arith.constant 0.000000e+00 : f32
      %42 = vector.broadcast %cst_33 : f32 to vector<8x128xf32>
      %c0_34 = arith.constant 0 : index
      %c0_35 = arith.constant 0 : index
      %c0_36 = arith.constant 0 : index
      %43 = vector.load %arg7[%c0_34, %c0_35, %c0_36] : memref<1x8x128xf32, #tpu.memory_space<vmem>>, vector<1x8x128xf32>
      %44 = vector.shape_cast %43 : vector<1x8x128xf32> to vector<8x128xf32>
      %45 = vector.shape_cast %42 : vector<8x128xf32> to vector<1x8x128xf32>
      tpu.vector_store %arg7[%c0_34, %c0_35, %c0_36], %45 {strides = array<i32>} : memref<1x8x128xf32, #tpu.memory_space<vmem>>, vector<1x8x128xf32>,
    } else {
    }
    %cst = arith.constant 0.000000e+00 : f32
    %3 = vector.broadcast %cst : f32 to vector<8x128xf32>
    %c0 = arith.constant 0 : index
    %c0_1 = arith.constant 0 : index
    %c0_2 = arith.constant 0 : index
    %c0_3 = arith.constant 0 : index
    %4 = vector.load %arg3[%c0, %c0_1, %c0_2, %c0_3] : memref<1x1x8x128xf32, #tpu.memory_space<vmem>>, vector<1x1x8x128xf32>
    %5 = vector.shape_cast %4 : vector<1x1x8x128xf32> to vector<1x8x128xf32>
    %c0_4 = arith.constant 0 : index
    %c0_5 = arith.constant 0 : index
    %c0_6 = arith.constant 0 : index
    %c0_7 = arith.constant 0 : index
    %6 = vector.load %arg4[%c0_4, %c0_5, %c0_6, %c0_7] : memref<1x1x8x128xf32, #tpu.memory_space<vmem>>, vector<1x1x8x128xf32>
    %7 = vector.shape_cast %6 : vector<1x1x8x128xf32> to vector<1x8x128xf32>
    %c0_8 = arith.constant 0 : index
    %c0_9 = arith.constant 0 : index
    %c0_10 = arith.constant 0 : index
    %c0_11 = arith.constant 0 : index
    %8 = vector.load %arg5[%c0_8, %c0_9, %c0_10, %c0_11] : memref<1x1x8x128xf32, #tpu.memory_space<vmem>>, vector<1x1x8x128xf32>
    %9 = vector.shape_cast %8 : vector<1x1x8x128xf32> to vector<1x8x128xf32>
    %cst_12 = arith.constant 5.000000e-01 : f32
    %10 = vector.broadcast %cst_12 : f32 to vector<1x8x128xf32>
    %11 = arith.mulf %10, %5 : vector<1x8x128xf32>
    %12 = math.tanh %11 : vector<1x8x128xf32>
    %cst_13 = arith.constant 5.000000e-01 : f32
    %13 = vector.broadcast %cst_13 : f32 to vector<1x8x128xf32>
    %14 = arith.mulf %13, %12 : vector<1x8x128xf32>
    %cst_14 = arith.constant 5.000000e-01 : f32
    %15 = vector.broadcast %cst_14 : f32 to vector<1x8x128xf32>
    %16 = arith.addf %14, %15 : vector<1x8x128xf32>
    %17 = arith.mulf %16, %7 : vector<1x8x128xf32>
    %18 = arith.addf %16, %7 : vector<1x8x128xf32>
    %19 = arith.subf %18, %17 : vector<1x8x128xf32>
    %20 = arith.mulf %9, %19 : vector<1x8x128xf32>
    %21 = arith.addf %18, %20 : vector<1x8x128xf32>
    %cst_15 = arith.constant dense<0.000000e+00> : vector<8x128xf32>
    %22 = vector.multi_reduction <add>, %17, %cst_15 [0] : vector<1x8x128xf32> to vector<8x128xf32>
    %cst_16 = arith.constant dense<0.000000e+00> : vector<8x128xf32>
    %23 = vector.multi_reduction <add>, %21, %cst_16 [0] : vector<1x8x128xf32> to vector<8x128xf32>
    %24 = arith.addf %3, %22 : vector<8x128xf32>
    %25 = arith.addf %3, %23 : vector<8x128xf32>
    %c0_17 = arith.constant 0 : index
    %c0_18 = arith.constant 0 : index
    %c0_19 = arith.constant 0 : index
    %26 = vector.load %arg6[%c0_17, %c0_18, %c0_19] : memref<1x8x128xf32, #tpu.memory_space<vmem>>, vector<1x8x128xf32>
    %27 = vector.shape_cast %26 : vector<1x8x128xf32> to vector<8x128xf32>
    %28 = arith.addf %27, %24 : vector<8x128xf32>
    %c0_20 = arith.constant 0 : index
    %c0_21 = arith.constant 0 : index
    %c0_22 = arith.constant 0 : index
    %29 = vector.load %arg6[%c0_20, %c0_21, %c0_22] : memref<1x8x128xf32, #tpu.memory_space<vmem>>, vector<1x8x128xf32>
    %30 = vector.shape_cast %29 : vector<1x8x128xf32> to vector<8x128xf32>
    %31 = vector.shape_cast %28 : vector<8x128xf32> to vector<1x8x128xf32>
    tpu.vector_store %arg6[%c0_20, %c0_21, %c0_22], %31 {strides = array<i32>} : memref<1x8x128xf32, #tpu.memory_space<vmem>>, vector<1x8x128xf32>,
    %c0_23 = arith.constant 0 : index
    %c0_24 = arith.constant 0 : index
    %c0_25 = arith.constant 0 : index
    %32 = vector.load %arg7[%c0_23, %c0_24, %c0_25] : memref<1x8x128xf32, #tpu.memory_space<vmem>>, vector<1x8x128xf32>
    %33 = vector.shape_cast %32 : vector<1x8x128xf32> to vector<8x128xf32>
    %34 = arith.addf %33, %25 : vector<8x128xf32>
    %c0_26 = arith.constant 0 : index
    %c0_27 = arith.constant 0 : index
    %c0_28 = arith.constant 0 : index
    %35 = vector.load %arg7[%c0_26, %c0_27, %c0_28] : memref<1x8x128xf32, #tpu.memory_space<vmem>>, vector<1x8x128xf32>
    %36 = vector.shape_cast %35 : vector<1x8x128xf32> to vector<8x128xf32>
    %37 = vector.shape_cast %34 : vector<8x128xf32> to vector<1x8x128xf32>
    tpu.vector_store %arg7[%c0_26, %c0_27, %c0_28], %37 {strides = array<i32>} : memref<1x8x128xf32, #tpu.memory_space<vmem>>, vector<1x8x128xf32>,
    return
  }
  func.func @transform_0(%arg0: i32, %arg1: i32, %arg2: i32) -> (i32, i32, i32, i32) {
    %c1_i32 = arith.constant 1 : i32
    %0 = arith.muli %arg1, %c1_i32 : i32
    %1 = arith.addi %0, %arg2 : i32
    %c0_i32 = arith.constant 0 : i32
    %c0_i32_0 = arith.constant 0 : i32
    %c0_i32_1 = arith.constant 0 : i32
    return %arg0, %1, %c0_i32, %c0_i32_0 : i32, i32, i32, i32
  }
  func.func @transform_1(%arg0: i32, %arg1: i32, %arg2: i32) -> (i32, i32, i32, i32) {
    %c1_i32 = arith.constant 1 : i32
    %0 = arith.muli %arg1, %c1_i32 : i32
    %1 = arith.addi %0, %arg2 : i32
    %c0_i32 = arith.constant 0 : i32
    %c0_i32_0 = arith.constant 0 : i32
    %c0_i32_1 = arith.constant 0 : i32
    return %arg0, %1, %c0_i32, %c0_i32_0 : i32, i32, i32, i32
  }
  func.func @transform_2(%arg0: i32, %arg1: i32, %arg2: i32) -> (i32, i32, i32, i32) {
    %c1_i32 = arith.constant 1 : i32
    %0 = arith.muli %arg1, %c1_i32 : i32
    %1 = arith.addi %0, %arg2 : i32
    %c0_i32 = arith.constant 0 : i32
    %c0_i32_0 = arith.constant 0 : i32
    %c0_i32_1 = arith.constant 0 : i32
    return %arg0, %1, %c0_i32, %c0_i32_0 : i32, i32, i32, i32
  }
  func.func @transform_3(%arg0: i32, %arg1: i32, %arg2: i32) -> (i32, i32, i32) {
    %c1_i32 = arith.constant 1 : i32
    %0 = arith.muli %arg0, %c1_i32 : i32
    %1 = arith.addi %0, %arg1 : i32
    %c0_i32 = arith.constant 0 : i32
    %c0_i32_0 = arith.constant 0 : i32
    %c0_i32_1 = arith.constant 0 : i32
    return %1, %c0_i32, %c0_i32_0 : i32, i32, i32
  }
  func.func @transform_4(%arg0: i32, %arg1: i32, %arg2: i32) -> (i32, i32, i32) {
    %c1_i32 = arith.constant 1 : i32
    %0 = arith.muli %arg0, %c1_i32 : i32
    %1 = arith.addi %0, %arg1 : i32
    %c0_i32 = arith.constant 0 : i32
    %c0_i32_0 = arith.constant 0 : i32
    %c0_i32_1 = arith.constant 0 : i32
    return %1, %c0_i32, %c0_i32_0 : i32, i32, i32
  }
}

</mosaic_0001>

<llo_original>
// kernel: tpu_custom_call.1
$region0: #{tpu_custom_call.1}
  #allocation0 [shape = 'u32[]', space=smem, size = 0x4, offset = 0x4, fixed_abs, tag = 'smem constant byte address 0x4 - core index']
  #allocation1 [shape = 'u32[144,128]{1,0:T(1,128)}', space=vmem, size = 0x12000, scoped, tag = 'internal scratch']
  %s0 = inlined_call_operand.hbm [shape: f32[2,1,8,128], index: 0, kind: input, shape index: {}]
  %s1 = inlined_call_operand.hbm [shape: f32[2,1,8,128], index: 1, kind: input, shape index: {}]
  %s2 = inlined_call_operand.hbm [shape: f32[2,1,8,128], index: 2, kind: input, shape index: {}]
  %s3 = inlined_call_operand.hbm [shape: f32[2,8,128], index: 3, kind: output, shape index: {0}]
  %s4 = inlined_call_operand.hbm [shape: f32[2,8,128], index: 4, kind: output, shape index: {1}]
  %5 = xla_tuple %s3, %s4
  %s6 = sld [smem:[#allocation0]]
  $region69: #{tpu_custom_call.1} parent=0
    _
  %s8 = ssub.s32 1, %s6
  %s9 = scalar_select 0, %s8, %s6
  $region1: #{tpu_custom_call.1} parent=0
    #allocation2 [shape = 'u8[8192]{0}', space=vmem, size = 0x2000, scoped, tag = 'input window, operand 0']
    #allocation3 [shape = 's32[2]{0}', space=sflag, size = 0x8, scoped, tag = 'scoped memory for tpu_custom_call.1']
    #allocation4 [shape = 's32[2]{0}', space=sflag, size = 0x8, scoped, tag = 'scoped memory for tpu_custom_call.1']
    #allocation5 [shape = 'u8[8192]{0}', space=vmem, size = 0x2000, scoped, tag = 'input window, operand 1']
    #allocation6 [shape = 's32[2]{0}', space=sflag, size = 0x8, scoped, tag = 'scoped memory for tpu_custom_call.1']
    #allocation7 [shape = 'u8[8192]{0}', space=vmem, size = 0x2000, scoped, tag = 'input window, operand 2']
    #allocation8 [shape = 'u8[8192]{0}', space=vmem, size = 0x2000, scoped, tag = 'output window, operand 0']
    #allocation9 [shape = 'u8[8192]{0}', space=vmem, size = 0x2000, scoped, tag = 'output window, operand 1']
    #allocation10 [shape = 's32[2]{0}', space=sflag, size = 0x8, scoped, tag = 'scoped memory for tpu_custom_call.1']
    %10 = vsyncpa [#allocation3], 0
    %s11 = scalar_lea.sflag [#allocation3], 1
    %12 = vsyncpa %s11, 0
    %13 = vsyncpa [#allocation6], 0
    %s14 = scalar_lea.sflag [#allocation6], 1
    %15 = vsyncpa %s14, 0
    %16 = vsyncpa [#allocation4], 0
    %s17 = scalar_lea.sflag [#allocation4], 1
    %18 = vsyncpa %s17, 0
    %19 = vsyncpa [#allocation10], 0
    %s20 = scalar_lea.sflag [#allocation10], 1
    %21 = vsyncpa %s20, 0
    loop: start=0, step=1, limit=4
    $region2: #{tpu_custom_call.1} parent=1 // loop_pre_header
      _
    $region3: #{tpu_custom_call.1} parent=1 // loop_header
      %s23 = sphi 0, %s27
      %p24 = scmp.ge.s32.totalorder %s23, 4
      %s30 = sphi 0, %s49
      %s31 = sphi 0, %s45
      %s32 = sphi 0, %s41
      %s33 = sphi 0, %s30
      %s34 = sphi 0, %s31
      %s35 = sphi 0, %s32
      %s36 = sphi 0, %s33
      %s37 = sphi 0, %s34
      %s38 = sphi 0, %s35
      %s56 = sphi 0, %s58
      %s59 = sphi 0, %s56
      %s60 = sphi 0, %s59
      %s76 = sphi 0, %s60
      %s86 = sphi 0, %s88
      %s89 = sphi 0, %s86
      %s90 = sphi 0, %s89
      %s106 = sphi 0, %s90
      %s116 = sphi 0, %s118
      %s119 = sphi 0, %s116
      %s120 = sphi 0, %s119
      %s136 = sphi 0, %s120
      %s144 = sphi 0, %s146
      %s147 = sphi 0, %s144
      %s148 = sphi 0, %s147
      %s164 = sphi 0, %s148
      %s172 = sphi 0, %s174
      %s175 = sphi 0, %s172
      %s176 = sphi 0, %s175
      %s192 = sphi 0, %s176
    $region4: #{tpu_custom_call.1} parent=1 // loop_header_branch
      %26 = sbr.rel (%p24) target = $region8
    $region5: #{tpu_custom_call.1} parent=1 // loop_body
      %s28 = ssub.s32 %s23, 1
      %s29 = ssub.s32 %s23, 2
      %s39 = sadd.s32 1, %s32
      %p40 = scmp.ge.s32.totalorder %s39, 1
      %s41 = scalar_select %p40, 0, %s39
      %s42 = sadd.s32 1, %s31
      %s43 = scalar_select %p40, %s42, %s31
      %p44 = scmp.ge.s32.totalorder %s43, 1
      %s45 = scalar_select %p44, 0, %s43
      %s46 = sadd.s32 1, %s30
      %s47 = scalar_select %p44, %s46, %s30
      %p48 = scmp.ge.s32.totalorder %s47, 2
      %s49 = scalar_select %p48, 0, %s47
      %s50 = sadd.s32 %s31, %s32
      %s51 = sadd.s32 %s45, %s41
      %s52 = ssub.s32 %s30, %s49
      %s53 = ssub.s32 %s50, %s51
      %s54 = sor.u32 %s52, %s53
      %p55 = scmp.eq.s32.totalorder %s54, 0
      %s57 = sadd.s32 %s56, 1
      %s58 = scalar_select %p55, %s56, %s57
      %p61 = pneg %p55
      %p62 = scmp.eq.s32.totalorder %s23, 1
      %p63 = por %p61, %p62
      %p64 = scmp.ne.s32.totalorder %s56, %s59
      %p65 = scmp.eq.s32.totalorder %s23, 0
      %p66 = por %p64, %p65
      %p67 = scmp.ne.s32.totalorder %s56, %s59
      %p68 = scmp.eq.s32.totalorder %s28, 1
      %p69 = por %p67, %p68
      %p70 = scmp.ne.s32.totalorder %s59, %s60
      %p71 = scmp.eq.s32.totalorder %s28, 0
      %p72 = por %p70, %p71
      %p73 = scmp.ne.s32.totalorder %s59, %s60
      %p74 = scmp.eq.s32.totalorder %s29, 1
      %p75 = por %p73, %p74
      %p77 = scmp.ne.s32.totalorder %s60, %s76
      %p78 = scmp.eq.s32.totalorder %s29, 0
      %p79 = por %p77, %p78
      %s80 = sadd.s32 %s31, %s32
      %s81 = sadd.s32 %s45, %s41
      %s82 = ssub.s32 %s30, %s49
      %s83 = ssub.s32 %s80, %s81
      %s84 = sor.u32 %s82, %s83
      %p85 = scmp.eq.s32.totalorder %s84, 0
      %s87 = sadd.s32 %s86, 1
      %s88 = scalar_select %p85, %s86, %s87
      %p91 = pneg %p85
      %p92 = scmp.eq.s32.totalorder %s23, 1
      %p93 = por %p91, %p92
      %p94 = scmp.ne.s32.totalorder %s86, %s89
      %p95 = scmp.eq.s32.totalorder %s23, 0
      %p96 = por %p94, %p95
      %p97 = scmp.ne.s32.totalorder %s86, %s89
      %p98 = scmp.eq.s32.totalorder %s28, 1
      %p99 = por %p97, %p98
      %p100 = scmp.ne.s32.totalorder %s89, %s90
      %p101 = scmp.eq.s32.totalorder %s28, 0
      %p102 = por %p100, %p101
      %p103 = scmp.ne.s32.totalorder %s89, %s90
      %p104 = scmp.eq.s32.totalorder %s29, 1
      %p105 = por %p103, %p104
      %p107 = scmp.ne.s32.totalorder %s90, %s106
      %p108 = scmp.eq.s32.totalorder %s29, 0
      %p109 = por %p107, %p108
      %s110 = sadd.s32 %s31, %s32
      %s111 = sadd.s32 %s45, %s41
      %s112 = ssub.s32 %s30, %s49
      %s113 = ssub.s32 %s110, %s111
      %s114 = sor.u32 %s112, %s113
      %p115 = scmp.eq.s32.totalorder %s114, 0
      %s117 = sadd.s32 %s116, 1
      %s118 = scalar_select %p115, %s116, %s117
      %p121 = pneg %p115
      %p122 = scmp.eq.s32.totalorder %s23, 1
      %p123 = por %p121, %p122
      %p124 = scmp.ne.s32.totalorder %s116, %s119
      %p125 = scmp.eq.s32.totalorder %s23, 0
      %p126 = por %p124, %p125
      %p127 = scmp.ne.s32.totalorder %s116, %s119
      %p128 = scmp.eq.s32.totalorder %s28, 1
      %p129 = por %p127, %p128
      %p130 = scmp.ne.s32.totalorder %s119, %s120
      %p131 = scmp.eq.s32.totalorder %s28, 0
      %p132 = por %p130, %p131
      %p133 = scmp.ne.s32.totalorder %s119, %s120
      %p134 = scmp.eq.s32.totalorder %s29, 1
      %p135 = por %p133, %p134
      %p137 = scmp.ne.s32.totalorder %s120, %s136
      %p138 = scmp.eq.s32.totalorder %s29, 0
      %p139 = por %p137, %p138
      %s140 = sadd.s32 %s30, %s31
      %s141 = sadd.s32 %s49, %s45
      %s142 = ssub.s32 %s140, %s141
      %p143 = scmp.eq.s32.totalorder %s142, 0
      %s145 = sadd.s32 %s144, 1
      %s146 = scalar_select %p143, %s144, %s145
      %p149 = pneg %p143
      %p150 = scmp.eq.s32.totalorder %s23, 1
      %p151 = por %p149, %p150
      %p152 = scmp.ne.s32.totalorder %s144, %s147
      %p153 = scmp.eq.s32.totalorder %s23, 0
      %p154 = por %p152, %p153
      %p155 = scmp.ne.s32.totalorder %s144, %s147
      %p156 = scmp.eq.s32.totalorder %s28, 1
      %p157 = por %p155, %p156
      %p158 = scmp.ne.s32.totalorder %s147, %s148
      %p159 = scmp.eq.s32.totalorder %s28, 0
      %p160 = por %p158, %p159
      %p161 = scmp.ne.s32.totalorder %s147, %s148
      %p162 = scmp.eq.s32.totalorder %s29, 1
      %p163 = por %p161, %p162
      %p165 = scmp.ne.s32.totalorder %s148, %s164
      %p166 = scmp.eq.s32.totalorder %s29, 0
      %p167 = por %p165, %p166
      %s168 = sadd.s32 %s30, %s31
      %s169 = sadd.s32 %s49, %s45
      %s170 = ssub.s32 %s168, %s169
      %p171 = scmp.eq.s32.totalorder %s170, 0
      %s173 = sadd.s32 %s172, 1
      %s174 = scalar_select %p171, %s172, %s173
      %p177 = pneg %p171
      %p178 = scmp.eq.s32.totalorder %s23, 1
      %p179 = por %p177, %p178
      %p180 = scmp.ne.s32.totalorder %s172, %s175
      %p181 = scmp.eq.s32.totalorder %s23, 0
      %p182 = por %p180, %p181
      %p183 = scmp.ne.s32.totalorder %s172, %s175
      %p184 = scmp.eq.s32.totalorder %s28, 1
      %p185 = por %p183, %p184
      %p186 = scmp.ne.s32.totalorder %s175, %s176
      %p187 = scmp.eq.s32.totalorder %s28, 0
      %p188 = por %p186, %p187
      %p189 = scmp.ne.s32.totalorder %s175, %s176
      %p190 = scmp.eq.s32.totalorder %s29, 1
      %p191 = por %p189, %p190
      %p193 = scmp.ne.s32.totalorder %s176, %s192
      %p194 = scmp.eq.s32.totalorder %s29, 0
      %p195 = por %p193, %p194
      %p196 = scmp.le.s32.totalorder 1, %s23
      %p197 = scmp.lt.s32.totalorder %s23, 3
      %p198 = pnand %p196, %p197
      %p199 = pneg %p198
      // Predicated region
      $region9: #{tpu_custom_call.1} parent=5 // pred_check
        _
      $region10: #{tpu_custom_call.1} parent=5 // pred_check_branch
        %201 = sbr.rel (%p198) target = $region12
      $region11: #{tpu_custom_call.1} parent=5 // pred_region
        %s202 = ssub.s32 %s23, 1
      $region12: #{tpu_custom_call.1} parent=5 // pred_fallthru
        _
      %p203 = scmp.lt.s32.totalorder %s23, 2
      // Predicated region
      $region13: #{tpu_custom_call.1} parent=5 // pred_check
        %p204 = pneg %p203
      $region14: #{tpu_custom_call.1} parent=5 // pred_check_branch
        %206 = sbr.rel (%p204) target = $region16
      $region15: #{tpu_custom_call.1} parent=5 // pred_region
        // Predicated region
        $region17: #{tpu_custom_call.1} parent=15 // pred_check
          %p207 = pneg %p66
        $region18: #{tpu_custom_call.1} parent=15 // pred_check_branch
          %209 = sbr.rel (%p207) target = $region20
        $region19: #{tpu_custom_call.1} parent=15 // pred_region
          %s210 = sand.u32 %s56, 1
          %s211 = scalar_lea.sflag [#allocation3], %s210
          %s212 = sand.u32 %s56, 1
          %s213 = smul.addr %s212, 8
          %s214 = scalar_lea.vmem [#allocation2], %s213
          %s215 = sadd.s32 %s31, %s32
          %s217 = ssub.s32 128, 128
          %218 = vsyncadd %s211, %s217
          %s219 = sadd.s32 %s215, %s30
          %s220 = smul.addr %s219, 128
          %s221 = scalar_lea.hbm %s0, %s220
          %s223 = sshll.u32 %s214, 4
          %s224 = int_to_ptr.vmem [resolvable:$true] %s223
          %226 = dma.hbm_to_vmem [thread:$0]  %s221, 128, %s224, %s211
        $region20: #{tpu_custom_call.1} parent=15 // pred_fallthru
          _
        // Predicated region
        $region21: #{tpu_custom_call.1} parent=15 // pred_check
          %p227 = pneg %p96
        $region22: #{tpu_custom_call.1} parent=15 // pred_check_branch
          %229 = sbr.rel (%p227) target = $region24
        $region23: #{tpu_custom_call.1} parent=15 // pred_region
          %s230 = sand.u32 %s23, 1
          %s231 = scalar_lea.sflag [#allocation6], %s230
          %s232 = sand.u32 %s86, 1
          %s233 = smul.addr %s232, 8
          %s234 = scalar_lea.vmem [#allocation5], %s233
          %s235 = sadd.s32 %s31, %s32
          %s237 = ssub.s32 128, 128
          %238 = vsyncadd %s231, %s237
          %s239 = sadd.s32 %s235, %s30
          %s240 = smul.addr %s239, 128
          %s241 = scalar_lea.hbm %s1, %s240
          %s243 = sshll.u32 %s234, 4
          %s244 = int_to_ptr.vmem [resolvable:$true] %s243
          %246 = dma.hbm_to_vmem [thread:$0]  %s241, 128, %s244, %s231
        $region24: #{tpu_custom_call.1} parent=15 // pred_fallthru
          _
        // Predicated region
        $region25: #{tpu_custom_call.1} parent=15 // pred_check
          %p247 = pneg %p126
        $region26: #{tpu_custom_call.1} parent=15 // pred_check_branch
          %249 = sbr.rel (%p247) target = $region28
        $region27: #{tpu_custom_call.1} parent=15 // pred_region
          %s250 = sand.u32 %s23, 1
          %s251 = scalar_lea.sflag [#allocation6], %s250
          %s252 = sand.u32 %s116, 1
          %s253 = smul.addr %s252, 8
          %s254 = scalar_lea.vmem [#allocation7], %s253
          %s255 = sadd.s32 %s31, %s32
          %s257 = ssub.s32 128, 128
          %258 = vsyncadd %s251, %s257
          %s259 = sadd.s32 %s255, %s30
          %s260 = smul.addr %s259, 128
          %s261 = scalar_lea.hbm %s2, %s260
          %s263 = sshll.u32 %s254, 4
          %s264 = int_to_ptr.vmem [resolvable:$true] %s263
          %266 = dma.hbm_to_vmem [thread:$0]  %s261, 128, %s264, %s251
        $region28: #{tpu_custom_call.1} parent=15 // pred_fallthru
          _
      $region16: #{tpu_custom_call.1} parent=5 // pred_fallthru
        _
      %p267 = scmp.le.s32.totalorder 1, %s23
      %p268 = scmp.lt.s32.totalorder %s23, 3
      %p269 = pnand %p267, %p268
      %p270 = pneg %p269
      // Predicated region
      $region29: #{tpu_custom_call.1} parent=5 // pred_check
        _
      $region30: #{tpu_custom_call.1} parent=5 // pred_check_branch
        %272 = sbr.rel (%p269) target = $region32
      $region31: #{tpu_custom_call.1} parent=5 // pred_region
        %s273 = ssub.s32 %s23, 1
        %s274 = sand.u32 %s59, 1
        %s275 = scalar_lea.sflag [#allocation3], %s274
        %s276 = sand.u32 %s59, 1
        %s277 = smul.addr %s276, 8
        %s278 = scalar_lea.vmem [#allocation2], %s277
        // Predicated region
        $region33: #{tpu_custom_call.1} parent=31 // pred_check
          %p279 = pneg %p72
        $region34: #{tpu_custom_call.1} parent=31 // pred_check_branch
          %281 = sbr.rel (%p279) target = $region36
        $region35: #{tpu_custom_call.1} parent=31 // pred_region
          %282 = dma.done %s275, 128
        $region36: #{tpu_custom_call.1} parent=31 // pred_fallthru
          _
        %s283 = sand.u32 %s28, 1
        %s284 = scalar_lea.sflag [#allocation6], %s283
        %s285 = sand.u32 %s89, 1
        %s286 = smul.addr %s285, 8
        %s287 = scalar_lea.vmem [#allocation5], %s286
        // Predicated region
        $region37: #{tpu_custom_call.1} parent=31 // pred_check
          %p288 = pneg %p102
        $region38: #{tpu_custom_call.1} parent=31 // pred_check_branch
          %290 = sbr.rel (%p288) target = $region40
        $region39: #{tpu_custom_call.1} parent=31 // pred_region
          %291 = dma.done %s284, 128
        $region40: #{tpu_custom_call.1} parent=31 // pred_fallthru
          _
        %s292 = sand.u32 %s28, 1
        %s293 = scalar_lea.sflag [#allocation6], %s292
        %s294 = sand.u32 %s119, 1
        %s295 = smul.addr %s294, 8
        %s296 = scalar_lea.vmem [#allocation7], %s295
        // Predicated region
        $region41: #{tpu_custom_call.1} parent=31 // pred_check
          %p297 = pneg %p132
        $region42: #{tpu_custom_call.1} parent=31 // pred_check_branch
          %299 = sbr.rel (%p297) target = $region44
        $region43: #{tpu_custom_call.1} parent=31 // pred_region
          %300 = dma.done %s293, 128
        $region44: #{tpu_custom_call.1} parent=31 // pred_fallthru
          _
        %s301 = sand.u32 %s59, 1
        %s302 = scalar_lea.sflag [#allocation3], %s301
        %s303 = sand.u32 %s59, 1
        %s304 = smul.addr %s303, 8
        %s305 = scalar_lea.vmem [#allocation2], %s304
        %p306 = pneg %p72
        %p307 = pneg %p69
        %s308 = sand.u32 %s28, 1
        %s309 = scalar_lea.sflag [#allocation6], %s308
        %s310 = sand.u32 %s89, 1
        %s311 = smul.addr %s310, 8
        %s312 = scalar_lea.vmem [#allocation5], %s311
        %p313 = pneg %p102
        %p314 = pneg %p99
        %s315 = sand.u32 %s28, 1
        %s316 = scalar_lea.sflag [#allocation6], %s315
        %s317 = sand.u32 %s119, 1
        %s318 = smul.addr %s317, 8
        %s319 = scalar_lea.vmem [#allocation7], %s318
        %p320 = pneg %p132
        %p321 = pneg %p129
        %p322 = pneg %p160
        %p323 = pneg %p157
        %s324 = sand.u32 %s147, 1
        %s325 = scalar_lea.sflag [#allocation4], %s324
        %s326 = sand.u32 %s147, 1
        %s327 = smul.addr %s326, 8
        %s328 = scalar_lea.vmem [#allocation8], %s327
        %p329 = pneg %p188
        %p330 = pneg %p185
        %s331 = sand.u32 %s175, 1
        %s332 = scalar_lea.sflag [#allocation10], %s331
        %s333 = sand.u32 %s175, 1
        %s334 = smul.addr %s333, 8
        %s335 = scalar_lea.vmem [#allocation9], %s334
        %s336 = sadd.s32 %s34, %s35
        %s337 = sadd.s32 %s34, %s35
        %s338 = sadd.s32 %s34, %s35
        %s339 = sadd.s32 %s33, %s34
        %s340 = sadd.s32 %s33, %s34
        %p341 = scmp.eq.s32.totalorder %s35, 0
        // Predicated region
        $region45: #{tpu_custom_call.1} parent=31 // pred_check
          %p342 = pneg %p341
        $region46: #{tpu_custom_call.1} parent=31 // pred_check_branch
          %344 = sbr.rel (%p342) target = $region48
        $region47: #{tpu_custom_call.1} parent=31 // pred_region
          %345 = vst [vmem:[%s328] sm:$0xff] 0.0
          %346 = vst [vmem:[%s335] sm:$0xff] 0.0
        $region48: #{tpu_custom_call.1} parent=31 // pred_fallthru
          _
        %v347 = vld [vmem:[%s278] sm:$0xff]
        %v348 = vld [vmem:[%s287] sm:$0xff]
        %v349 = vld [vmem:[%s296] sm:$0xff]
        %v350 = vmul.f32 %v347, 0.5
        %v351 = vtanh.pop %v350
        %v352 = vmul.f32 %v351, 0.5
        %v353 = vadd.f32 %v352, 0.5
        %v354 = vmul.f32 %v353, %v348
        %v355 = vadd.f32 %v353, %v348
        %v356 = vsub.f32 %v355, %v354
        %v357 = vmul.f32 %v349, %v356
        %v358 = vadd.f32 %v355, %v357
        %v359 = vadd.f32 %v354, 0.0
        %v360 = vadd.f32 %v358, 0.0
        %v361 = vadd.f32 %v359, 0.0
        %v362 = vadd.f32 %v360, 0.0
        %v363 = vld [vmem:[%s328] sm:$0xff]
        %v364 = vadd.f32 %v363, %v361
        %365 = vst [vmem:[%s328] sm:$0xff] %v364
        %v366 = vld [vmem:[%s335] sm:$0xff]
        %v367 = vadd.f32 %v366, %v362
        %368 = vst [vmem:[%s335] sm:$0xff] %v367
        %s369 = sand.u32 %s147, 1
        %s370 = scalar_lea.sflag [#allocation4], %s369
        %s371 = sand.u32 %s147, 1
        %s372 = smul.addr %s371, 8
        %s373 = scalar_lea.vmem [#allocation8], %s372
        %s374 = sand.u32 %s175, 1
        %s375 = scalar_lea.sflag [#allocation10], %s374
        %s376 = sand.u32 %s175, 1
        %s377 = smul.addr %s376, 8
        %s378 = scalar_lea.vmem [#allocation9], %s377
        // Predicated region
        $region49: #{tpu_custom_call.1} parent=31 // pred_check
          %p379 = pneg %p157
        $region50: #{tpu_custom_call.1} parent=31 // pred_check_branch
          %381 = sbr.rel (%p379) target = $region52
        $region51: #{tpu_custom_call.1} parent=31 // pred_region
          %s382 = sadd.s32 %s33, %s34
          %s384 = ssub.s32 128, 128
          %385 = vsyncadd %s370, %s384
          %s386 = smul.addr %s382, 128
          %s387 = scalar_lea.hbm %s3, %s386
          %s389 = sshll.u32 %s373, 4
          %s390 = int_to_ptr.vmem [resolvable:$true] %s389
          %392 = dma.vmem_to_hbm [thread:$0]  %s390, 128, %s387, %s370
        $region52: #{tpu_custom_call.1} parent=31 // pred_fallthru
          _
        // Predicated region
        $region53: #{tpu_custom_call.1} parent=31 // pred_check
          %p393 = pneg %p185
        $region54: #{tpu_custom_call.1} parent=31 // pred_check_branch
          %395 = sbr.rel (%p393) target = $region56
        $region55: #{tpu_custom_call.1} parent=31 // pred_region
          %s396 = sadd.s32 %s33, %s34
          %s398 = ssub.s32 128, 128
          %399 = vsyncadd %s375, %s398
          %s400 = smul.addr %s396, 128
          %s401 = scalar_lea.hbm %s4, %s400
          %s403 = sshll.u32 %s378, 4
          %s404 = int_to_ptr.vmem [resolvable:$true] %s403
          %406 = dma.vmem_to_hbm [thread:$0]  %s404, 128, %s401, %s375
        $region56: #{tpu_custom_call.1} parent=31 // pred_fallthru
          _
      $region32: #{tpu_custom_call.1} parent=5 // pred_fallthru
        _
      %p407 = scmp.le.s32.totalorder 2, %s23
      // Predicated region
      $region57: #{tpu_custom_call.1} parent=5 // pred_check
        %p408 = pneg %p407
      $region58: #{tpu_custom_call.1} parent=5 // pred_check_branch
        %410 = sbr.rel (%p408) target = $region60
      $region59: #{tpu_custom_call.1} parent=5 // pred_region
        %s411 = ssub.s32 %s23, 2
        // Predicated region
        $region61: #{tpu_custom_call.1} parent=59 // pred_check
          %p412 = pneg %p163
        $region62: #{tpu_custom_call.1} parent=59 // pred_check_branch
          %414 = sbr.rel (%p412) target = $region64
        $region63: #{tpu_custom_call.1} parent=59 // pred_region
          %s415 = sand.u32 %s148, 1
          %s416 = scalar_lea.sflag [#allocation4], %s415
          %s417 = sand.u32 %s148, 1
          %s418 = smul.addr %s417, 8
          %s419 = scalar_lea.vmem [#allocation8], %s418
          %420 = dma.done %s416, 128
        $region64: #{tpu_custom_call.1} parent=59 // pred_fallthru
          _
        // Predicated region
        $region65: #{tpu_custom_call.1} parent=59 // pred_check
          %p421 = pneg %p191
        $region66: #{tpu_custom_call.1} parent=59 // pred_check_branch
          %423 = sbr.rel (%p421) target = $region68
        $region67: #{tpu_custom_call.1} parent=59 // pred_region
          %s424 = sand.u32 %s176, 1
          %s425 = scalar_lea.sflag [#allocation10], %s424
          %s426 = sand.u32 %s176, 1
          %s427 = smul.addr %s426, 8
          %s428 = scalar_lea.vmem [#allocation9], %s427
          %429 = dma.done %s425, 128
        $region68: #{tpu_custom_call.1} parent=59 // pred_fallthru
          _
      $region60: #{tpu_custom_call.1} parent=5 // pred_fallthru
        _
    $region6: #{tpu_custom_call.1} parent=1 // loop_footer
      %s27 = sadd.s32 1, %s23
    $region7: #{tpu_custom_call.1} parent=1 // loop_footer_branch
      %22 = sbr.rel target = $region3
    $region8: #{tpu_custom_call.1} parent=1 // loop_exit
      _
    %430 = vsyncpa [#allocation3], 1
    %s431 = scalar_lea.sflag [#allocation3], 1
    %432 = vsyncpa %s431, 1
    %433 = vsyncpa [#allocation6], 1
    %s434 = scalar_lea.sflag [#allocation6], 1
    %435 = vsyncpa %s434, 1
    %436 = vsyncpa [#allocation4], 1
    %s437 = scalar_lea.sflag [#allocation4], 1
    %438 = vsyncpa %s437, 1
    %439 = vsyncpa [#allocation10], 1
    %s440 = scalar_lea.sflag [#allocation10], 1
    %441 = vsyncpa %s440, 1

</llo_original>
